<compile_context>
chip_gen: v6e
topology: v6e:2x2x1
jax: 0.10.0
libtpu: 0.0.40
codegen_flags: <defaults>
</compile_context>

<pallas_src>
import functools

import jax
import jax.numpy as jnp
from jax.experimental import pallas as pl
from jax.experimental.pallas import tpu as pltpu

OBS_DIM = 8
HIDDEN = 128
N_ACTIONS = 4
HEAD_PAD = 8          # narrow fused head: cols 0:4 = logits, col 4 = value, 5:8 = 0
DEFAULT_TB = 2048     # batch tile (rows per grid step)


def actor_critic_kernel(x_ref, w1_ref, wh_ref, b1_ref, bh_ref, out_ref):
    """One batch tile of the fused ActorCritic forward.

    x_ref:   [TB, 8]    f32 states
    w1_ref:  [8, 128]   f32 affine weight, stored [in, out]
    wh_ref:  [128, 8]   f32 fused head weight (cols 0:4 action, col 4 value, rest 0)
    b1_ref:  [1, 128]   f32 affine bias
    bh_ref:  [1, 8]     f32 fused head bias
    out_ref: [TB, 8]    f32 fused output (cols 0:4 logits, col 4 value)
    """
    # hidden = relu(x @ W1 + b1) — f32 MXU operands, f32 accumulate.
    h = jnp.dot(x_ref[...], w1_ref[...],
                preferred_element_type=jnp.float32) + b1_ref[...]
    h = jnp.maximum(h, 0.0)                                   # [TB, 128]

    # Fused action/value head: one MXU push, narrow 8-wide store.
    out_ref[...] = jnp.dot(h, wh_ref[...],
                           preferred_element_type=jnp.float32) + bh_ref[...]


def _round_up(x, m):
    return ((x + m - 1) // m) * m


@functools.partial(jax.jit, static_argnames=("block_b",))
def actor_critic_forward(state, params, *, block_b=DEFAULT_TB):
    """state: [B, 8] f32. Returns (action_logits [B, 4], state_value [B, 1])."""
    w1, wh, b1, bh = params
    B = state.shape[0]

    # Pick the batch tile (all Python ints at trace time):
    #   * never bigger than the (8-rounded) batch,
    #   * at least 2 grid steps when the batch can be split, so v7x's second
    #     TensorCore gets work via dimension_semantics=("parallel",).
    tb = min(block_b, _round_up(B, 8))
    if B > 8 and pl.cdiv(B, tb) < 2:
        tb = _round_up(pl.cdiv(B, 2), 8)
    num_blocks = pl.cdiv(B, tb)
    b_pad = num_blocks * tb
    if b_pad != B:
        state = jnp.pad(state, ((0, b_pad - B), (0, 0)))

    out = pl.pallas_call(
        actor_critic_kernel,
        out_shape=jax.ShapeDtypeStruct((b_pad, HEAD_PAD), jnp.float32),
        grid=(num_blocks,),
        in_specs=[
            pl.BlockSpec((tb, OBS_DIM), lambda i: (i, 0)),        # batch-tiled states
            pl.BlockSpec((OBS_DIM, HIDDEN), lambda i: (0, 0)),    # W1 VMEM-resident
            pl.BlockSpec((HIDDEN, HEAD_PAD), lambda i: (0, 0)),   # fused head weight
            pl.BlockSpec((1, HIDDEN), lambda i: (0, 0)),          # affine bias
            pl.BlockSpec((1, HEAD_PAD), lambda i: (0, 0)),        # head bias
        ],
        out_specs=pl.BlockSpec((tb, HEAD_PAD), lambda i: (i, 0)),
        compiler_params=pltpu.CompilerParams(
            dimension_semantics=("parallel",)),
    )(state, w1, wh, b1, bh)

    logits = out[:B, :N_ACTIONS]
    value = out[:B, N_ACTIONS:N_ACTIONS + 1]
    return logits, value


def init_params(key):
    """Deterministic init mirroring PyTorch nn.Linear defaults
    (uniform(-1/sqrt(fan_in), 1/sqrt(fan_in))), packed for the fused kernel:
      w1  [8, 128]   affine weight ([in, out])
      wh  [128, 8]   fused head weight: cols 0:4 = action_layer, col 4 = value_layer
      b1  [1, 128]   affine bias
      bh  [1, 8]     fused head bias
    """
    def linear(key, fan_in, fan_out):
        kw, kb = jax.random.split(key)
        bound = 1.0 / jnp.sqrt(jnp.float32(fan_in))
        w = jax.random.uniform(kw, (fan_in, fan_out), jnp.float32, -bound, bound)
        b = jax.random.uniform(kb, (fan_out,), jnp.float32, -bound, bound)
        return w, b

    k1, k2, k3 = jax.random.split(key, 3)
    w1, b1 = linear(k1, OBS_DIM, HIDDEN)       # affine
    wa, ba = linear(k2, HIDDEN, N_ACTIONS)     # action_layer
    wv, bv = linear(k3, HIDDEN, 1)             # value_layer

    wh = jnp.zeros((HIDDEN, HEAD_PAD), jnp.float32)
    wh = wh.at[:, :N_ACTIONS].set(wa)
    wh = wh.at[:, N_ACTIONS:N_ACTIONS + 1].set(wv)

    bh = jnp.zeros((1, HEAD_PAD), jnp.float32)
    bh = bh.at[0, :N_ACTIONS].set(ba)
    bh = bh.at[0, N_ACTIONS].set(bv[0])
    return (w1, wh, b1.reshape(1, HIDDEN), bh)


def act(state, params, sample_key):
    """Forward semantics of ActorCritic.forward: sampled actions, their
    log-probs, and state values. Sampling / log-prob / episode buffers are
    host-side JAX glue."""
    # TODO(synk): Categorical sampling, .item(), and the Python-list episode
    # buffers (logprobs/state_values/rewards) have no Pallas equivalent; they
    # stay in the JAX wrapper.
    logits, value = actor_critic_forward(state, params)
    action = jax.random.categorical(sample_key, logits, axis=-1)       # [B]
    logp_all = jax.nn.log_softmax(logits, axis=-1)                     # stable, no log(0)
    logprob = jnp.take_along_axis(logp_all, action[:, None], axis=-1)[:, 0]
    return action, logprob, value


def _reference_forward(state, params):
    """Pure-JAX f32 reference of the fused forward."""
    w1, wh, b1, bh = params
    h = jnp.maximum(jnp.dot(state, w1, preferred_element_type=jnp.float32) + b1, 0.0)
    out = jnp.dot(h, wh, preferred_element_type=jnp.float32) + bh
    return out[:, :N_ACTIONS], out[:, N_ACTIONS:N_ACTIONS + 1]


if __name__ == "__main__":
    key = jax.random.PRNGKey(0)
    pkey, skey, akey, bkey = jax.random.split(key, 4)

    params = init_params(pkey)

    # LunarLander observation dim = 8; small batch of states.
    state = jax.random.normal(skey, (2, OBS_DIM), jnp.float32)
    action, logprob, value = act(state, params, akey)
    jax.block_until_ready((action, logprob, value))

    logits_k, value_k = actor_critic_forward(state, params)
    logits_ref, value_ref = _reference_forward(state, params)
    assert jnp.allclose(logits_k, logits_ref, atol=1e-4, rtol=1e-4)
    assert jnp.allclose(value_k, value_ref, atol=1e-4, rtol=1e-4)
    # Probabilities sum to 1 after the wrapper-side softmax.
    assert jnp.allclose(jax.nn.softmax(logits_k, axis=-1).sum(-1), 1.0, atol=1e-5)

    # Second check exercising the multi-block (grid > 1) path.
    state_big = jax.random.normal(bkey, (272, OBS_DIM), jnp.float32)
    logits_b, value_b = actor_critic_forward(state_big, params)
    logits_bref, value_bref = _reference_forward(state_big, params)
    jax.block_until_ready((logits_b, value_b))
    assert jnp.allclose(logits_b, logits_bref, atol=1e-4, rtol=1e-4)
    assert jnp.allclose(value_b, value_bref, atol=1e-4, rtol=1e-4)

    print("KERNEL_OK")
</pallas_src>

<mosaic_0001>
module attributes {stable_mosaic.version = 11 : i64} {
  func.func @actor_critic_kernel(%arg0: i32, %arg1: memref<8x8xf32, #tpu.memory_space<vmem>>, %arg2: memref<8x128xf32, #tpu.memory_space<vmem>>, %arg3: memref<128x8xf32, #tpu.memory_space<vmem>>, %arg4: memref<1x128xf32, #tpu.memory_space<vmem>>, %arg5: memref<1x8xf32, #tpu.memory_space<vmem>>, %arg6: memref<8x8xf32, #tpu.memory_space<vmem>>) attributes {dimension_semantics = [#tpu.dimension_semantics<parallel>], iteration_bounds = array<i64: 1>, scalar_prefetch = 0 : i64, scratch_operands = 0 : i64, tpu.core_type = #tpu.core_type<tc>, window_params = [{transform_indices = @transform_0, window_bounds = array<i64: 8, 8>}, {pipeline_mode = #tpu.pipeline_mode<synchronous>, transform_indices = @transform_1, window_bounds = array<i64: 8, 128>}, {pipeline_mode = #tpu.pipeline_mode<synchronous>, transform_indices = @transform_2, window_bounds = array<i64: 128, 8>}, {pipeline_mode = #tpu.pipeline_mode<synchronous>, transform_indices = @transform_3, window_bounds = array<i64: 1, 128>}, {pipeline_mode = #tpu.pipeline_mode<synchronous>, transform_indices = @transform_4, window_bounds = array<i64: 1, 8>}, {transform_indices = @transform_5, window_bounds = array<i64: 8, 8>}]} {
    %c0 = arith.constant 0 : index
    %c0_0 = arith.constant 0 : index
    %0 = vector.load %arg1[%c0, %c0_0] : memref<8x8xf32, #tpu.memory_space<vmem>>, vector<8x8xf32>
    %c0_1 = arith.constant 0 : index
    %c0_2 = arith.constant 0 : index
    %1 = vector.load %arg2[%c0_1, %c0_2] : memref<8x128xf32, #tpu.memory_space<vmem>>, vector<8x128xf32>
    %cst = arith.constant dense<0.000000e+00> : vector<8x128xf32>
    %2 = tpu.matmul %0, %1, %cst {dimension_numbers = #tpu.dot_dimension_numbers<[1], [0], [0], [1], [0, 0, 1, 1], [], []>} : vector<8x8xf32>, vector<8x128xf32>, vector<8x128xf32> -> vector<8x128xf32>
    %c0_3 = arith.constant 0 : index
    %c0_4 = arith.constant 0 : index
    %3 = vector.load %arg4[%c0_3, %c0_4] : memref<1x128xf32, #tpu.memory_space<vmem>>, vector<1x128xf32>
    %4 = vector.broadcast %3 : vector<1x128xf32> to vector<8x128xf32>
    %5 = arith.addf %2, %4 : vector<8x128xf32>
    %cst_5 = arith.constant 0.000000e+00 : f32
    %6 = vector.broadcast %cst_5 : f32 to vector<8x128xf32>
    %7 = arith.maximumf %5, %6 : vector<8x128xf32>
    %c0_6 = arith.constant 0 : index
    %c0_7 = arith.constant 0 : index
    %8 = vector.load %arg3[%c0_6, %c0_7] : memref<128x8xf32, #tpu.memory_space<vmem>>, vector<128x8xf32>
    %cst_8 = arith.constant dense<0.000000e+00> : vector<8x8xf32>
    %9 = tpu.matmul %7, %8, %cst_8 {dimension_numbers = #tpu.dot_dimension_numbers<[1], [0], [0], [1], [0, 0, 1, 1], [], []>} : vector<8x128xf32>, vector<128x8xf32>, vector<8x8xf32> -> vector<8x8xf32>
    %c0_9 = arith.constant 0 : index
    %c0_10 = arith.constant 0 : index
    %10 = vector.load %arg5[%c0_9, %c0_10] : memref<1x8xf32, #tpu.memory_space<vmem>>, vector<1x8xf32>
    %11 = vector.broadcast %10 : vector<1x8xf32> to vector<8x8xf32>
    %12 = arith.addf %9, %11 : vector<8x8xf32>
    %c0_11 = arith.constant 0 : index
    %c0_12 = arith.constant 0 : index
    %13 = vector.load %arg6[%c0_11, %c0_12] : memref<8x8xf32, #tpu.memory_space<vmem>>, vector<8x8xf32>
    tpu.vector_store %arg6[%c0_11, %c0_12], %12 {strides = array<i32>} : memref<8x8xf32, #tpu.memory_space<vmem>>, vector<8x8xf32>,
    return
  }
  func.func @transform_0(%arg0: i32) -> (i32, i32) {
    %c0_i32 = arith.constant 0 : i32
    %c0_i32_0 = arith.constant 0 : i32
    return %arg0, %c0_i32 : i32, i32
  }
  func.func @transform_1(%arg0: i32) -> (i32, i32) {
    %c0_i32 = arith.constant 0 : i32
    %c0_i32_0 = arith.constant 0 : i32
    %c0_i32_1 = arith.constant 0 : i32
    return %c0_i32, %c0_i32_0 : i32, i32
  }
  func.func @transform_2(%arg0: i32) -> (i32, i32) {
    %c0_i32 = arith.constant 0 : i32
    %c0_i32_0 = arith.constant 0 : i32
    %c0_i32_1 = arith.constant 0 : i32
    return %c0_i32, %c0_i32_0 : i32, i32
  }
  func.func @transform_3(%arg0: i32) -> (i32, i32) {
    %c0_i32 = arith.constant 0 : i32
    %c0_i32_0 = arith.constant 0 : i32
    %c0_i32_1 = arith.constant 0 : i32
    return %c0_i32, %c0_i32_0 : i32, i32
  }
  func.func @transform_4(%arg0: i32) -> (i32, i32) {
    %c0_i32 = arith.constant 0 : i32
    %c0_i32_0 = arith.constant 0 : i32
    %c0_i32_1 = arith.constant 0 : i32
    return %c0_i32, %c0_i32_0 : i32, i32
  }
  func.func @transform_5(%arg0: i32) -> (i32, i32) {
    %c0_i32 = arith.constant 0 : i32
    %c0_i32_0 = arith.constant 0 : i32
    return %arg0, %c0_i32 : i32, i32
  }
}

</mosaic_0001>

<llo_original>
// kernel: actor_critic_forward.1
$region0: #{actor_critic_forward.1}
  #allocation0 [shape = 'u32[]', space=smem, size = 0x4, offset = 0x4, fixed_abs, tag = 'smem constant byte address 0x4 - core index']
  #allocation1 [shape = 'u32[144,128]{1,0:T(1,128)}', space=vmem, size = 0x12000, scoped, tag = 'internal scratch']
  %s0 = inlined_call_operand.vmem [shape: f32[8,8], index: 0, kind: input, shape index: {}]
  %s1 = inlined_call_operand.vmem [shape: f32[8,128], index: 1, kind: input, shape index: {}]
  %s2 = inlined_call_operand.vmem [shape: f32[128,8], index: 2, kind: input, shape index: {}]
  %s3 = inlined_call_operand.vmem [shape: f32[1,128], index: 3, kind: input, shape index: {}]
  %s4 = inlined_call_operand.vmem [shape: f32[1,8], index: 4, kind: input, shape index: {}]
  %s5 = inlined_call_operand.vmem [shape: f32[8,8], index: 5, kind: output, shape index: {}]
  %s6 = sld [smem:[#allocation0]]
  $region30: #{actor_critic_forward.1} parent=0
    _
  %s8 = ssub.s32 1, %s6
  %s9 = scalar_select 0, %s8, %s6
  // Predicated region
  $region2: #{actor_critic_forward.1} parent=0 // pred_check
    _
  $region3: #{actor_critic_forward.1} parent=0 // pred_check_branch
    %11 = sbr.rel (0) target = $region5
  $region4: #{actor_critic_forward.1} parent=0 // pred_region
    _
  $region5: #{actor_critic_forward.1} parent=0 // pred_fallthru
    _
  // Predicated region
  $region6: #{actor_critic_forward.1} parent=0 // pred_check
    _
  $region7: #{actor_critic_forward.1} parent=0 // pred_check_branch
    %13 = sbr.rel (0) target = $region9
  $region8: #{actor_critic_forward.1} parent=0 // pred_region
    _
  $region9: #{actor_critic_forward.1} parent=0 // pred_fallthru
    _
  // Predicated region
  $region10: #{actor_critic_forward.1} parent=0 // pred_check
    _
  $region11: #{actor_critic_forward.1} parent=0 // pred_check_branch
    %15 = sbr.rel (0) target = $region13
  $region12: #{actor_critic_forward.1} parent=0 // pred_region
    _
  $region13: #{actor_critic_forward.1} parent=0 // pred_fallthru
    _
  // Predicated region
  $region14: #{actor_critic_forward.1} parent=0 // pred_check
    _
  $region15: #{actor_critic_forward.1} parent=0 // pred_check_branch
    %17 = sbr.rel (0) target = $region17
  $region16: #{actor_critic_forward.1} parent=0 // pred_region
    _
  $region17: #{actor_critic_forward.1} parent=0 // pred_fallthru
    _
  // Predicated region
  $region18: #{actor_critic_forward.1} parent=0 // pred_check
    _
  $region19: #{actor_critic_forward.1} parent=0 // pred_check_branch
    %19 = sbr.rel (0) target = $region21
  $region20: #{actor_critic_forward.1} parent=0 // pred_region
    _
  $region21: #{actor_critic_forward.1} parent=0 // pred_fallthru
    _
  %v20 = vld [vmem:[%s0] sm:$0xff]
  %v21 = vld [vmem:[%s1] sm:$0xff]
  %v22 = vld [vmem:[%s3] sm:$0x1]
  %v24 = vlaneseq
  %v25 = vshrl.u32 %v24, 7
  %v26 = vsub.s32 0, %v25
  %v27 = vrot.slane %v22, %v26
  %vm29 = vcmask 64512
  %v31 = vsel %vm29, %v20, 0
  %33 = vmatprep.subr.mxu0 0.0
  %34 = vmatpush1.msra.mxu0 0.0
  %35 = vmatprep.subr.mxu0 0.0
  %36 = vmatpush1.msra.mxu0 0.0
  %37 = vmatprep.subr.mxu0 0.0
  %38 = vmatpush1.msra.mxu0 0.0
  %39 = vmatprep.subr.mxu0 0.0
  %40 = vmatpush1.msra.mxu0 0.0
  %41 = vmatprep.subr.mxu0 0.0
  %42 = vmatpush1.msra.mxu0 0.0
  %43 = vmatprep.subr.mxu0 0.0
  %44 = vmatpush1.msra.mxu0 0.0
  %45 = vmatprep.subr.mxu0 0.0
  %46 = vmatpush1.msra.mxu0 0.0
  %47 = vmatprep.subr.mxu0 0.0
  %48 = vmatpush1.msra.mxu0 0.0
  %49 = vmatprep.subr.mxu0 0.0
  %50 = vmatpush1.msra.mxu0 0.0
  %51 = vmatprep.subr.mxu0 0.0
  %52 = vmatpush1.msra.mxu0 0.0
  %53 = vmatprep.subr.mxu0 0.0
  %54 = vmatpush1.msra.mxu0 0.0
  %55 = vmatprep.subr.mxu0 0.0
  %56 = vmatpush1.msra.mxu0 0.0
  %57 = vmatprep.subr.mxu0 0.0
  %58 = vmatpush1.msra.mxu0 0.0
  %59 = vmatprep.subr.mxu0 0.0
  %60 = vmatpush1.msra.mxu0 0.0
  %61 = vmatprep.subr.mxu0 0.0
  %62 = vmatpush1.msra.mxu0 0.0
  %63 = vmatprep.subr.mxu0 0.0
  %64 = vmatpush1.msra.mxu0 %v21
  %65 = vmatprep.subr.mxu0 0.0
  %66 = vmatpush2.msra.mxu0 0.0
  %67 = vmatprep.subr.mxu0 0.0
  %68 = vmatpush2.msra.mxu0 0.0
  %69 = vmatprep.subr.mxu0 0.0
  %70 = vmatpush2.msra.mxu0 0.0
  %71 = vmatprep.subr.mxu0 0.0
  %72 = vmatpush2.msra.mxu0 0.0
  %73 = vmatprep.subr.mxu0 0.0
  %74 = vmatpush2.msra.mxu0 0.0
  %75 = vmatprep.subr.mxu0 0.0
  %76 = vmatpush2.msra.mxu0 0.0
  %77 = vmatprep.subr.mxu0 0.0
  %78 = vmatpush2.msra.mxu0 0.0
  %79 = vmatprep.subr.mxu0 0.0
  %80 = vmatpush2.msra.mxu0 0.0
  %81 = vmatprep.subr.mxu0 0.0
  %82 = vmatpush2.msra.mxu0 0.0
  %83 = vmatprep.subr.mxu0 0.0
  %84 = vmatpush2.msra.mxu0 0.0
  %85 = vmatprep.subr.mxu0 0.0
  %86 = vmatpush2.msra.mxu0 0.0
  %87 = vmatprep.subr.mxu0 0.0
  %88 = vmatpush2.msra.mxu0 0.0
  %89 = vmatprep.subr.mxu0 0.0
  %90 = vmatpush2.msra.mxu0 0.0
  %91 = vmatprep.subr.mxu0 0.0
  %92 = vmatpush2.msra.mxu0 0.0
  %93 = vmatprep.subr.mxu0 0.0
  %94 = vmatpush2.msra.mxu0 0.0
  %95 = vmatprep.subr.mxu0 0.0
  %96 = vmatpush2.msra.mxu0 0.0
  %97 = vmatprep.mubr.f32.mxu0 0.0
  %98 = vmatmul.mubr.f32.gmra.mxu0 %v31
  %v99 = vpop.f32.mrf.mxu0
  %v100 = vadd.f32 %v27, %v99
  %v101 = vpop.f32.mrf.mxu0
  %102 = vdwg.mxu0
  %v103 = vmax.f32 %v100, 0.0
  %v104 = vld [vmem:[%s2] sm:$0xff]
  %v105 = vld [vmem:[%s2 + $0x8] sm:$0xff]
  %v106 = vld [vmem:[%s2 + $0x10] sm:$0xff]
  %v107 = vld [vmem:[%s2 + $0x18] sm:$0xff]
  %v108 = vld [vmem:[%s2 + $0x20] sm:$0xff]
  %v109 = vld [vmem:[%s2 + $0x28] sm:$0xff]
  %v110 = vld [vmem:[%s2 + $0x30] sm:$0xff]
  %v111 = vld [vmem:[%s2 + $0x38] sm:$0xff]
  %v112 = vld [vmem:[%s2 + $0x40] sm:$0xff]
  %v113 = vld [vmem:[%s2 + $0x48] sm:$0xff]
  %v114 = vld [vmem:[%s2 + $0x50] sm:$0xff]
  %v115 = vld [vmem:[%s2 + $0x58] sm:$0xff]
  %v116 = vld [vmem:[%s2 + $0x60] sm:$0xff]
  %v117 = vld [vmem:[%s2 + $0x68] sm:$0xff]
  %v118 = vld [vmem:[%s2 + $0x70] sm:$0xff]
  %v119 = vld [vmem:[%s2 + $0x78] sm:$0xff]
  %v120 = vld [vmem:[%s4] sm:$0x1]
  %v122 = vlaneseq
  %v123 = vshrl.u32 %v122, 7
  %v124 = vsub.s32 0, %v123
  %v125 = vrot.slane %v120, %v124
  %127 = vmatprep.subr.mxu0 0.0
  %128 = vmatpush1.msra.mxu0 %v119
  %129 = vmatprep.subr.mxu0 0.0
  %130 = vmatpush1.msra.mxu0 %v118
  %131 = vmatprep.subr.mxu0 0.0
  %132 = vmatpush1.msra.mxu0 %v117
  %133 = vmatprep.subr.mxu0 0.0
  %134 = vmatpush1.msra.mxu0 %v116
  %135 = vmatprep.subr.mxu0 0.0
  %136 = vmatpush1.msra.mxu0 %v115
  %137 = vmatprep.subr.mxu0 0.0
  %138 = vmatpush1.msra.mxu0 %v114
  %139 = vmatprep.subr.mxu0 0.0
  %140 = vmatpush1.msra.mxu0 %v113
  %141 = vmatprep.subr.mxu0 0.0
  %142 = vmatpush1.msra.mxu0 %v112
  %143 = vmatprep.subr.mxu0 0.0
  %144 = vmatpush1.msra.mxu0 %v111
  %145 = vmatprep.subr.mxu0 0.0
  %146 = vmatpush1.msra.mxu0 %v110
  %147 = vmatprep.subr.mxu0 0.0
  %148 = vmatpush1.msra.mxu0 %v109
  %149 = vmatprep.subr.mxu0 0.0
  %150 = vmatpush1.msra.mxu0 %v108
  %151 = vmatprep.subr.mxu0 0.0
  %152 = vmatpush1.msra.mxu0 %v107
  %153 = vmatprep.subr.mxu0 0.0
  %154 = vmatpush1.msra.mxu0 %v106
  %155 = vmatprep.subr.mxu0 0.0
  %156 = vmatpush1.msra.mxu0 %v105
  %157 = vmatprep.subr.mxu0 0.0
  %158 = vmatpush1.msra.mxu0 %v104
  %159 = vmatprep.subr.mxu0 0.0
  %160 = vmatpush2.msra.mxu0 0.0
  %161 = vmatprep.subr.mxu0 0.0
  %162 = vmatpush2.msra.mxu0 0.0
  %163 = vmatprep.subr.mxu0 0.0
  %164 = vmatpush2.msra.mxu0 0.0
  %165 = vmatprep.subr.mxu0 0.0
  %166 = vmatpush2.msra.mxu0 0.0
  %167 = vmatprep.subr.mxu0 0.0
  %168 = vmatpush2.msra.mxu0 0.0
  %169 = vmatprep.subr.mxu0 0.0
  %170 = vmatpush2.msra.mxu0 0.0
  %171 = vmatprep.subr.mxu0 0.0
  %172 = vmatpush2.msra.mxu0 0.0
  %173 = vmatprep.subr.mxu0 0.0
  %174 = vmatpush2.msra.mxu0 0.0
  %175 = vmatprep.subr.mxu0 0.0
  %176 = vmatpush2.msra.mxu0 0.0
  %177 = vmatprep.subr.mxu0 0.0
  %178 = vmatpush2.msra.mxu0 0.0
  %179 = vmatprep.subr.mxu0 0.0
  %180 = vmatpush2.msra.mxu0 0.0
  %181 = vmatprep.subr.mxu0 0.0
  %182 = vmatpush2.msra.mxu0 0.0
  %183 = vmatprep.subr.mxu0 0.0
  %184 = vmatpush2.msra.mxu0 0.0
  %185 = vmatprep.subr.mxu0 0.0
  %186 = vmatpush2.msra.mxu0 0.0
  %187 = vmatprep.subr.mxu0 0.0
  %188 = vmatpush2.msra.mxu0 0.0
  %189 = vmatprep.subr.mxu0 0.0
  %190 = vmatpush2.msra.mxu0 0.0
  %191 = vmatprep.mubr.f32.mxu0 0.0
  %192 = vmatmul.mubr.f32.gmra.mxu0 %v103
  %v193 = vpop.f32.mrf.mxu0
  %v194 = vadd.f32 %v125, %v193
  %v195 = vpop.f32.mrf.mxu0
  %196 = vdwg.mxu0
  %197 = vst.msk [vmem:[%s5] sm:$0xff] %vm29, %v194
  // Predicated region
  $region22: #{actor_critic_forward.1} parent=0 // pred_check
    _
  $region23: #{actor_critic_forward.1} parent=0 // pred_check_branch
    %199 = sbr.rel (0) target = $region25
  $region24: #{actor_critic_forward.1} parent=0 // pred_region
    _
  $region25: #{actor_critic_forward.1} parent=0 // pred_fallthru
    _
  // Predicated region
  $region26: #{actor_critic_forward.1} parent=0 // pred_check
    _
  $region27: #{actor_critic_forward.1} parent=0 // pred_check_branch
    %201 = sbr.rel (0) target = $region29
  $region28: #{actor_critic_forward.1} parent=0 // pred_region
    _
  $region29: #{actor_critic_forward.1} parent=0 // pred_fallthru
    _

</llo_original>
